<compile_context>
chip_gen: v7x
topology: tpu7x:2x2x1
jax: 0.10.0
libtpu: 0.0.40
codegen_flags: <defaults>
</compile_context>

<pallas_src>
import jax
import jax.numpy as jnp
from jax.experimental import pallas as pl
from jax.experimental.pallas import tpu as pltpu


# ---------------------------------------------------------------------------
# Tiling heuristics
# ---------------------------------------------------------------------------
def _choose_group(batch, c_in, sublane=8, max_rows=32):
    """Fold G batches onto the sublane axis so G*c_in fills a multiple of the
    8 f32 sublanes (eliminates sublane-padding waste on the x DMA)."""
    g = 1
    while (batch % (2 * g) == 0 and 2 * g * c_in <= max_rows
           and (g * c_in) % sublane != 0):
        g *= 2
    return g


def _choose_tile_n(n, cap=16384):
    """Largest lane tile <= cap that divides n and keeps 128-lane alignment
    (multiples of 512 also line up with the 2x256 MXU on v6e/v7x).  Falls back
    to a single full-extent tile so no host-side padding pass is needed."""
    if n <= cap:
        return n
    best = 0
    t = 512
    while t <= cap:
        if n % t == 0:
            best = t
        t += 512
    if best:
        return best
    t = 128
    while t <= cap:
        if n % t == 0:
            best = t
        t += 128
    if best:
        return best
    # TODO(synk): ragged large N would need an in-kernel masked tail tile.
    return n


# ---------------------------------------------------------------------------
# Pallas kernel: block-diag (G*Cout x G*Cin) @ (G*Cin x TN) + bias + ReLU
# ---------------------------------------------------------------------------
def _engine_kernel(x_ref, wT_ref, b_ref, o_ref):
    # x_ref : (G*Cin,  TN)      f32   -- sublane-packed input tile
    # wT_ref: (G*Cout, G*Cin)   f32   -- block-diagonal weight, resident
    # b_ref : (G*Cout, 1)       f32   -- bias column, resident
    # o_ref : (G*Cout, TN)      f32   -- lane-dense output tile
    acc = jnp.dot(wT_ref[...], x_ref[...],
                  preferred_element_type=jnp.float32,
                  precision=jax.lax.Precision.HIGHEST)
    o_ref[...] = jnp.maximum(acc + b_ref[...], 0.0).astype(o_ref.dtype)


def _engine_execute(x_grp, wT_blk, b_blk, *, tile_n):
    """x_grp: [BG, GCin, N] f32; wT_blk: [GCout, GCin]; b_blk: [GCout, 1].
    Returns [BG, GCout, N] f32.  tile_n must divide N."""
    bg, gcin, n = x_grp.shape
    gcout = wT_blk.shape[0]
    assert n % tile_n == 0

    grid = (bg, n // tile_n)
    return pl.pallas_call(
        _engine_kernel,
        out_shape=jax.ShapeDtypeStruct((bg, gcout, n), jnp.float32),
        grid_spec=pltpu.PrefetchScalarGridSpec(
            num_scalar_prefetch=0,
            grid=grid,
            in_specs=[
                # x tile: batch-group dim squeezed, packed channels on
                # sublanes, spatial on lanes.
                pl.BlockSpec((None, gcin, tile_n), lambda bb, nn: (bb, 0, nn)),
                # tiny block-diagonal weight, resident across the grid
                pl.BlockSpec((gcout, gcin), lambda bb, nn: (0, 0)),
                # bias column, resident
                pl.BlockSpec((gcout, 1), lambda bb, nn: (0, 0)),
            ],
            out_specs=pl.BlockSpec((None, gcout, tile_n),
                                   lambda bb, nn: (bb, 0, nn)),
        ),
        compiler_params=pltpu.CompilerParams(
            dimension_semantics=("parallel", "parallel"),
            # explicit scoped budget (v5e defaults to 16 MiB); tiles here are
            # at most a few MiB double-buffered, far under all chips' VMEM.
            vmem_limit_bytes=32 * 1024 * 1024,
        ),
    )(x_grp, wT_blk, b_blk)


# ---------------------------------------------------------------------------
# Synthetic "engine" (stands in for the deserialized TRT engine)
# ---------------------------------------------------------------------------
class SyntheticEngine:
    """Mimics the tiny slice of the TRT engine API that TrtModel.forward uses."""

    def __init__(self, c_in, c_out, h, w):
        self.c_in, self.c_out, self.h, self.w = c_in, c_out, h, w
        self._binding_names = ["input", "output"]
        # per-binding shapes WITHOUT the batch dim (TRT implicit-batch style)
        self._binding_shapes = {"input": (c_in, h, w), "output": (c_out, h, w)}
        # Deterministic "weights baked into the engine".
        kw, kb = jax.random.split(jax.random.PRNGKey(42))
        self.weight = (jax.random.normal(kw, (c_in, c_out), jnp.float32)
                       / jnp.sqrt(jnp.float32(c_in)))
        self.bias = jax.random.normal(kb, (1, c_out), jnp.float32) * 0.1
        # Kernel-ready forms (precomputed once, f32 — no streaming cast pass).
        self.weight_T = self.weight.T                  # (c_out, c_in)
        self.bias_col = self.bias.reshape(c_out, 1)    # (c_out, 1)

    def get_binding_index(self, name):
        return self._binding_names.index(name)

    def get_binding_shape(self, idx):
        return self._binding_shapes[self._binding_names[idx]]

    def get_binding_dtype(self, idx):
        return jnp.float32

    def execute(self, x_nchw):
        """1x1 conv + bias + ReLU; x/y are only touched by the Pallas kernel
        plus free reshapes (no pad / cast / slice HBM passes)."""
        B, C, H, W = x_nchw.shape
        assert C == self.c_in
        N = H * W

        G = _choose_group(B, C)          # fold G batches onto the sublane axis
        tile_n = _choose_tile_n(N)
        # v7x has two TensorCores: if the grid would collapse to one step,
        # split the lane tile (stays a multiple of 128, still divides N).
        while (B // G) * (N // tile_n) < 2 and tile_n % 256 == 0:
            tile_n //= 2

        # Free reshape: [B, C, H, W] -> [B/G, G*C, N] (contiguous collapse).
        x_grp = x_nchw.reshape(B // G, G * C, N)
        # Tiny (weight-sized) block-diagonal weight and tiled bias column.
        wT_blk = jnp.kron(jnp.eye(G, dtype=self.weight_T.dtype), self.weight_T)
        b_blk = jnp.tile(self.bias_col, (G, 1))

        y = _engine_execute(x_grp, wT_blk, b_blk, tile_n=tile_n)
        # Free reshape back: [B/G, G*Cout, N] -> [B, Cout, H, W].
        return y.reshape(B, self.c_out, H, W)


# ---------------------------------------------------------------------------
# TrtModel equivalent (forward() binding semantics reproduced)
# ---------------------------------------------------------------------------
class TrtModelJAX:
    def __init__(self, engine, input_names, output_names):
        self.engine = engine
        self.input_names = input_names
        self.output_names = output_names

    def forward(self, *inputs):
        batch_size = inputs[0].shape[0]
        bindings = [None] * (len(self.input_names) + len(self.output_names))
        outputs = [None] * len(self.output_names)

        # Output "allocation": shape = (batch,) + engine binding shape.
        for i, output_name in enumerate(self.output_names):
            idx = self.engine.get_binding_index(output_name)
            dtype = self.engine.get_binding_dtype(idx)
            shape = (batch_size,) + tuple(self.engine.get_binding_shape(idx))
            outputs[i] = jax.ShapeDtypeStruct(shape, dtype)
            bindings[idx] = ("out", i)

        for i, input_name in enumerate(self.input_names):
            idx = self.engine.get_binding_index(input_name)
            bindings[idx] = ("in", i)

        # "execute_async": run the engine compute (Pallas kernel inside).
        result = self.engine.execute(inputs[0])
        assert result.shape == outputs[0].shape
        assert result.dtype == outputs[0].dtype
        outputs[0] = result

        if len(outputs) == 1:
            outputs = outputs[0]
        return outputs

    __call__ = forward


# ---------------------------------------------------------------------------
if __name__ == "__main__":
    B, C_IN, C_OUT, H, W = 2, 4, 8, 16, 16   # N = H*W = 256

    engine = SyntheticEngine(C_IN, C_OUT, H, W)
    model = TrtModelJAX(engine, input_names=["input"], output_names=["output"])

    x = jax.random.normal(jax.random.PRNGKey(0), (B, C_IN, H, W), jnp.float32)

    out = model(x)
    out = jax.block_until_ready(out)

    # Pure-JAX reference (f32 end to end, same HIGHEST-precision dot).
    ref = jnp.einsum("bchw,cd->bdhw", x, engine.weight,
                     precision=jax.lax.Precision.HIGHEST)
    ref = jnp.maximum(ref + engine.bias.reshape(1, C_OUT, 1, 1), 0.0)

    assert out.shape == (B, C_OUT, H, W)
    assert out.dtype == jnp.float32
    assert jnp.allclose(out, ref, atol=1e-3, rtol=1e-3)

    print("KERNEL_OK")
</pallas_src>

<mosaic_0001>
module attributes {stable_mosaic.version = 11 : i64} {
  func.func @_engine_kernel(%arg0: i32, %arg1: i32, %arg2: memref<1x8x128xf32, #tpu.memory_space<vmem>>, %arg3: memref<16x8xf32, #tpu.memory_space<vmem>>, %arg4: memref<16x1xf32, #tpu.memory_space<vmem>>, %arg5: memref<1x16x128xf32, #tpu.memory_space<vmem>>) attributes {dimension_semantics = [#tpu.dimension_semantics<parallel>, #tpu.dimension_semantics<parallel>], iteration_bounds = array<i64: 1, 2>, scalar_prefetch = 0 : i64, scratch_operands = 0 : i64, tpu.core_type = #tpu.core_type<tc>, window_params = [{transform_indices = @transform_0, window_bounds = array<i64: 1, 8, 128>}, {pipeline_mode = #tpu.pipeline_mode<synchronous>, transform_indices = @transform_1, window_bounds = array<i64: 16, 8>}, {pipeline_mode = #tpu.pipeline_mode<synchronous>, transform_indices = @transform_2, window_bounds = array<i64: 16, 1>}, {transform_indices = @transform_3, window_bounds = array<i64: 1, 16, 128>}]} {
    %c0 = arith.constant 0 : index
    %c0_0 = arith.constant 0 : index
    %0 = vector.load %arg3[%c0, %c0_0] : memref<16x8xf32, #tpu.memory_space<vmem>>, vector<16x8xf32>
    %c0_1 = arith.constant 0 : index
    %c0_2 = arith.constant 0 : index
    %c0_3 = arith.constant 0 : index
    %1 = vector.load %arg2[%c0_1, %c0_2, %c0_3] : memref<1x8x128xf32, #tpu.memory_space<vmem>>, vector<1x8x128xf32>
    %2 = vector.shape_cast %1 : vector<1x8x128xf32> to vector<8x128xf32>
    %cst = arith.constant dense<0.000000e+00> : vector<16x128xf32>
    %3 = tpu.matmul %0, %2, %cst {dimension_numbers = #tpu.dot_dimension_numbers<[1], [0], [0], [1], [0, 0, 1, 1], [], []>, precision = #tpu.contract_precision<fp32>} : vector<16x8xf32>, vector<8x128xf32>, vector<16x128xf32> -> vector<16x128xf32>
    %c0_4 = arith.constant 0 : index
    %c0_5 = arith.constant 0 : index
    %4 = vector.load %arg4[%c0_4, %c0_5] : memref<16x1xf32, #tpu.memory_space<vmem>>, vector<16x1xf32>
    %5 = vector.broadcast %4 : vector<16x1xf32> to vector<16x128xf32>
    %6 = arith.addf %3, %5 : vector<16x128xf32>
    %cst_6 = arith.constant 0.000000e+00 : f32
    %7 = vector.broadcast %cst_6 : f32 to vector<16x128xf32>
    %8 = arith.maximumf %6, %7 : vector<16x128xf32>
    %c0_7 = arith.constant 0 : index
    %c0_8 = arith.constant 0 : index
    %c0_9 = arith.constant 0 : index
    %9 = vector.load %arg5[%c0_7, %c0_8, %c0_9] : memref<1x16x128xf32, #tpu.memory_space<vmem>>, vector<1x16x128xf32>
    %10 = vector.shape_cast %9 : vector<1x16x128xf32> to vector<16x128xf32>
    %11 = vector.shape_cast %8 : vector<16x128xf32> to vector<1x16x128xf32>
    tpu.vector_store %arg5[%c0_7, %c0_8, %c0_9], %11 {strides = array<i32>} : memref<1x16x128xf32, #tpu.memory_space<vmem>>, vector<1x16x128xf32>,
    return
  }
  func.func @transform_0(%arg0: i32, %arg1: i32) -> (i32, i32, i32) {
    %c0_i32 = arith.constant 0 : i32
    %c0_i32_0 = arith.constant 0 : i32
    return %arg0, %c0_i32, %arg1 : i32, i32, i32
  }
  func.func @transform_1(%arg0: i32, %arg1: i32) -> (i32, i32) {
    %c0_i32 = arith.constant 0 : i32
    %c0_i32_0 = arith.constant 0 : i32
    %c0_i32_1 = arith.constant 0 : i32
    return %c0_i32, %c0_i32_0 : i32, i32
  }
  func.func @transform_2(%arg0: i32, %arg1: i32) -> (i32, i32) {
    %c0_i32 = arith.constant 0 : i32
    %c0_i32_0 = arith.constant 0 : i32
    %c0_i32_1 = arith.constant 0 : i32
    return %c0_i32, %c0_i32_0 : i32, i32
  }
  func.func @transform_3(%arg0: i32, %arg1: i32) -> (i32, i32, i32) {
    %c0_i32 = arith.constant 0 : i32
    %c0_i32_0 = arith.constant 0 : i32
    return %arg0, %c0_i32, %arg1 : i32, i32, i32
  }
}

</mosaic_0001>

<llo_original>
// kernel: tpu_custom_call.1
$region0: #{tpu_custom_call.1}
  #allocation0 [shape = 'u32[]', space=smem, size = 0x4, offset = 0x4, fixed_abs, tag = 'smem constant byte address 0x4 - core index']
  #allocation1 [shape = 'u32[144,128]{1,0:T(1,128)}', space=vmem, size = 0x12000, scoped, tag = 'internal scratch']
  %s0 = inlined_call_operand.vmem [shape: f32[1,8,256], index: 0, kind: input, shape index: {}]
  %s1 = inlined_call_operand.vmem [shape: f32[16,8], index: 1, kind: input, shape index: {}]
  %s2 = inlined_call_operand.vmem [shape: f32[16,1], index: 2, kind: input, shape index: {}]
  %s3 = inlined_call_operand.hbm [shape: f32[1,16,256], index: 3, kind: output, shape index: {}]
  %s4 = sld [smem:[#allocation0]]
  $region45: #{tpu_custom_call.1} parent=0
    _
  %s6 = ssub.s32 1, %s4
  %s7 = scalar_select 0, %s6, %s4
  $region1: #{tpu_custom_call.1} parent=0
    #allocation2 [shape = 'u8[16384]{0}', space=vmem, size = 0x4000, scoped, tag = 'output window, operand 0']
    #allocation3 [shape = 's32[2]{0}', space=sflag, size = 0x8, scoped, tag = 'scoped memory for tpu_custom_call.1']
    %8 = vsyncpa [#allocation3], 0
    %s9 = scalar_lea.sflag [#allocation3], 1
    %10 = vsyncpa %s9, 0
    loop: start=0, step=1, limit=4
    $region2: #{tpu_custom_call.1} parent=1 // loop_pre_header
      _
    $region3: #{tpu_custom_call.1} parent=1 // loop_header
      %s12 = sphi 0, %s16
      %p13 = scmp.ge.s32.totalorder %s12, 4
      %s19 = sphi 0, %s31
      %s20 = sphi 0, %s27
      %s21 = sphi 0, %s19
      %s22 = sphi 0, %s20
      %s23 = sphi 0, %s21
      %s24 = sphi 0, %s22
      %s36 = sphi 0, %s38
      %s39 = sphi 0, %s36
      %s40 = sphi 0, %s39
      %s56 = sphi 0, %s40
      %s60 = sphi 0, %s60
      %s62 = sphi 0, %s60
      %s63 = sphi 0, %s62
      %s77 = sphi 0, %s63
      %s81 = sphi 0, %s81
      %s83 = sphi 0, %s81
      %s84 = sphi 0, %s83
      %s98 = sphi 0, %s84
      %s106 = sphi 0, %s108
      %s109 = sphi 0, %s106
      %s110 = sphi 0, %s109
      %s126 = sphi 0, %s110
    $region4: #{tpu_custom_call.1} parent=1 // loop_header_branch
      %15 = sbr.rel (%p13) target = $region8
    $region5: #{tpu_custom_call.1} parent=1 // loop_body
      %s17 = ssub.s32 %s12, 1
      %s18 = ssub.s32 %s12, 2
      %s25 = sadd.s32 1, %s20
      %p26 = scmp.ge.s32.totalorder %s25, 2
      %s27 = scalar_select %p26, 0, %s25
      %s28 = sadd.s32 1, %s19
      %s29 = scalar_select %p26, %s28, %s19
      %p30 = scmp.ge.s32.totalorder %s29, 1
      %s31 = scalar_select %p30, 0, %s29
      %s32 = ssub.s32 %s19, %s31
      %s33 = ssub.s32 %s20, %s27
      %s34 = sor.u32 %s32, %s33
      %p35 = scmp.eq.s32.totalorder %s34, 0
      %s37 = sadd.s32 %s36, 1
      %s38 = scalar_select %p35, %s36, %s37
      %p41 = pneg %p35
      %p42 = scmp.eq.s32.totalorder %s12, 1
      %p43 = por %p41, %p42
      %p44 = scmp.ne.s32.totalorder %s36, %s39
      %p45 = scmp.eq.s32.totalorder %s12, 0
      %p46 = por %p44, %p45
      %p47 = scmp.ne.s32.totalorder %s36, %s39
      %p48 = scmp.eq.s32.totalorder %s17, 1
      %p49 = por %p47, %p48
      %p50 = scmp.ne.s32.totalorder %s39, %s40
      %p51 = scmp.eq.s32.totalorder %s17, 0
      %p52 = por %p50, %p51
      %p53 = scmp.ne.s32.totalorder %s39, %s40
      %p54 = scmp.eq.s32.totalorder %s18, 1
      %p55 = por %p53, %p54
      %p57 = scmp.ne.s32.totalorder %s40, %s56
      %p58 = scmp.eq.s32.totalorder %s18, 0
      %p59 = por %p57, %p58
      %s61 = sadd.s32 %s60, 1
      %p64 = scmp.eq.s32.totalorder %s12, 1
      %p65 = scmp.ne.s32.totalorder %s60, %s62
      %p66 = scmp.eq.s32.totalorder %s12, 0
      %p67 = por %p65, %p66
      %p68 = scmp.ne.s32.totalorder %s60, %s62
      %p69 = scmp.eq.s32.totalorder %s17, 1
      %p70 = por %p68, %p69
      %p71 = scmp.ne.s32.totalorder %s62, %s63
      %p72 = scmp.eq.s32.totalorder %s17, 0
      %p73 = por %p71, %p72
      %p74 = scmp.ne.s32.totalorder %s62, %s63
      %p75 = scmp.eq.s32.totalorder %s18, 1
      %p76 = por %p74, %p75
      %p78 = scmp.ne.s32.totalorder %s63, %s77
      %p79 = scmp.eq.s32.totalorder %s18, 0
      %p80 = por %p78, %p79
      %s82 = sadd.s32 %s81, 1
      %p85 = scmp.eq.s32.totalorder %s12, 1
      %p86 = scmp.ne.s32.totalorder %s81, %s83
      %p87 = scmp.eq.s32.totalorder %s12, 0
      %p88 = por %p86, %p87
      %p89 = scmp.ne.s32.totalorder %s81, %s83
      %p90 = scmp.eq.s32.totalorder %s17, 1
      %p91 = por %p89, %p90
      %p92 = scmp.ne.s32.totalorder %s83, %s84
      %p93 = scmp.eq.s32.totalorder %s17, 0
      %p94 = por %p92, %p93
      %p95 = scmp.ne.s32.totalorder %s83, %s84
      %p96 = scmp.eq.s32.totalorder %s18, 1
      %p97 = por %p95, %p96
      %p99 = scmp.ne.s32.totalorder %s84, %s98
      %p100 = scmp.eq.s32.totalorder %s18, 0
      %p101 = por %p99, %p100
      %s102 = ssub.s32 %s19, %s31
      %s103 = ssub.s32 %s20, %s27
      %s104 = sor.u32 %s102, %s103
      %p105 = scmp.eq.s32.totalorder %s104, 0
      %s107 = sadd.s32 %s106, 1
      %s108 = scalar_select %p105, %s106, %s107
      %p111 = pneg %p105
      %p112 = scmp.eq.s32.totalorder %s12, 1
      %p113 = por %p111, %p112
      %p114 = scmp.ne.s32.totalorder %s106, %s109
      %p115 = scmp.eq.s32.totalorder %s12, 0
      %p116 = por %p114, %p115
      %p117 = scmp.ne.s32.totalorder %s106, %s109
      %p118 = scmp.eq.s32.totalorder %s17, 1
      %p119 = por %p117, %p118
      %p120 = scmp.ne.s32.totalorder %s109, %s110
      %p121 = scmp.eq.s32.totalorder %s17, 0
      %p122 = por %p120, %p121
      %p123 = scmp.ne.s32.totalorder %s109, %s110
      %p124 = scmp.eq.s32.totalorder %s18, 1
      %p125 = por %p123, %p124
      %p127 = scmp.ne.s32.totalorder %s110, %s126
      %p128 = scmp.eq.s32.totalorder %s18, 0
      %p129 = por %p127, %p128
      %p130 = scmp.le.s32.totalorder 1, %s12
      %p131 = scmp.lt.s32.totalorder %s12, 3
      %p132 = pnand %p130, %p131
      %p133 = pneg %p132
      // Predicated region
      $region9: #{tpu_custom_call.1} parent=5 // pred_check
        _
      $region10: #{tpu_custom_call.1} parent=5 // pred_check_branch
        %135 = sbr.rel (%p132) target = $region12
      $region11: #{tpu_custom_call.1} parent=5 // pred_region
        %s136 = ssub.s32 %s12, 1
        // Predicated region
        $region13: #{tpu_custom_call.1} parent=11 // pred_check
          %p137 = pneg %p73
        $region14: #{tpu_custom_call.1} parent=11 // pred_check_branch
          %139 = sbr.rel (%p137) target = $region16
        $region15: #{tpu_custom_call.1} parent=11 // pred_region
          _
        $region16: #{tpu_custom_call.1} parent=11 // pred_fallthru
          _
        // Predicated region
        $region17: #{tpu_custom_call.1} parent=11 // pred_check
          %p140 = pneg %p94
        $region18: #{tpu_custom_call.1} parent=11 // pred_check_branch
          %142 = sbr.rel (%p140) target = $region20
        $region19: #{tpu_custom_call.1} parent=11 // pred_region
          _
        $region20: #{tpu_custom_call.1} parent=11 // pred_fallthru
          _
      $region12: #{tpu_custom_call.1} parent=5 // pred_fallthru
        _
      %p143 = scmp.lt.s32.totalorder %s12, 2
      // Predicated region
      $region21: #{tpu_custom_call.1} parent=5 // pred_check
        %p144 = pneg %p143
      $region22: #{tpu_custom_call.1} parent=5 // pred_check_branch
        %146 = sbr.rel (%p144) target = $region24
      $region23: #{tpu_custom_call.1} parent=5 // pred_region
        // Predicated region
        $region25: #{tpu_custom_call.1} parent=23 // pred_check
          %p147 = pneg %p46
        $region26: #{tpu_custom_call.1} parent=23 // pred_check_branch
          %149 = sbr.rel (%p147) target = $region28
        $region27: #{tpu_custom_call.1} parent=23 // pred_region
          %p150 = scmp.lt.s32.totalorder %s19, 0
          %s151 = scalar_select %p150, %s19, 0
          %p152 = scmp.lt.s32.totalorder %s20, 1
          %s153 = scalar_select %p152, %s20, 1
          %s154 = smul.addr %s151, 2
          %s155 = sadd.s32 %s153, %s154
          %s156 = smul.addr %s155, 8
          %s157 = scalar_lea.vmem %s0, %s156
        $region28: #{tpu_custom_call.1} parent=23 // pred_fallthru
          _
      $region24: #{tpu_custom_call.1} parent=5 // pred_fallthru
        _
      %p158 = scmp.le.s32.totalorder 1, %s12
      %p159 = scmp.lt.s32.totalorder %s12, 3
      %p160 = pnand %p158, %p159
      %p161 = pneg %p160
      // Predicated region
      $region29: #{tpu_custom_call.1} parent=5 // pred_check
        _
      $region30: #{tpu_custom_call.1} parent=5 // pred_check_branch
        %163 = sbr.rel (%p160) target = $region32
      $region31: #{tpu_custom_call.1} parent=5 // pred_region
        %s164 = ssub.s32 %s12, 1
        %p165 = scmp.lt.s32.totalorder %s21, 0
        %s166 = scalar_select %p165, %s21, 0
        %p167 = scmp.lt.s32.totalorder %s22, 1
        %s168 = scalar_select %p167, %s22, 1
        %s169 = smul.addr %s166, 2
        %s170 = sadd.s32 %s168, %s169
        %s171 = smul.addr %s170, 8
        %s172 = scalar_lea.vmem %s0, %s171
        %p173 = pneg %p52
        %p174 = pneg %p49
        %p175 = pneg %p73
        %p176 = pneg %p70
        %p177 = pneg %p94
        %p178 = pneg %p91
        %p179 = pneg %p122
        %p180 = pneg %p119
        %s181 = sand.u32 %s109, 1
        %s182 = scalar_lea.sflag [#allocation3], %s181
        %s183 = sand.u32 %s109, 1
        %s184 = smul.addr %s183, 16
        %s185 = scalar_lea.vmem [#allocation2], %s184
        %p186 = scmp.lt.s32.totalorder %s21, 0
        %s187 = scalar_select %p186, %s21, 0
        %p188 = scmp.lt.s32.totalorder %s22, 1
        %s189 = scalar_select %p188, %s22, 1
        %s190 = smul.addr %s187, 2
        %s191 = sadd.s32 %s189, %s190
        %s192 = smul.addr %s191, 8
        %s193 = scalar_lea.vmem %s0, %s192
        %v194 = vld [vmem:[%s1] sm:$0xff]
        %v195 = vld [vmem:[%s1 + $0x8] sm:$0xff]
        %v196 = vld [vmem:[%s193] sm:$0xff]
        %v197 = vld [vmem:[%s2] sm:$0xff]
        %v198 = vld [vmem:[%s2 + $0x8] sm:$0xff]
        %200 = vset.pattern.permute.xlu0 0
        %201 = vperm.xlu0 %200, %v197
        %v202 = vpop.permute.xlu0 %201
        %205 = vset.pattern.permute.xlu0 0
        %206 = vperm.xlu0 %205, %v198
        %v207 = vpop.permute.xlu0 %206
        %vm209 = vcmask 64512
        %v211 = vsel %vm209, %v194, 0
        %v214 = vsel %vm209, %v195, 0
        %216 = vmatprep.subr.mxu0 0.0
        %v217 = vand.u32 %v196, 4294901760
        %218 = vmatpush1.msra.mxu0 %v217
        %219 = vmatprep.subr.mxu0 0.0
        %220 = vmatpush1.msra.mxu0 0.0
        %221 = vmatprep.subr.mxu0 0.0
        %222 = vmatpush1.msra.mxu0 0.0
        %223 = vmatprep.subr.mxu0 0.0
        %224 = vmatpush1.msra.mxu0 0.0
        %225 = vmatprep.subr.mxu0 0.0
        %226 = vmatpush1.msra.mxu0 0.0
        %227 = vmatprep.subr.mxu0 0.0
        %228 = vmatpush1.msra.mxu0 0.0
        %229 = vmatprep.subr.mxu0 0.0
        %230 = vmatpush1.msra.mxu0 0.0
        %231 = vmatprep.subr.mxu0 0.0
        %232 = vmatpush1.msra.mxu0 0.0
        %233 = vmatprep.subr.mxu0 0.0
        %234 = vmatpush1.msra.mxu0 0.0
        %235 = vmatprep.subr.mxu0 0.0
        %236 = vmatpush1.msra.mxu0 0.0
        %237 = vmatprep.subr.mxu0 0.0
        %238 = vmatpush1.msra.mxu0 0.0
        %239 = vmatprep.subr.mxu0 0.0
        %240 = vmatpush1.msra.mxu0 0.0
        %241 = vmatprep.subr.mxu0 0.0
        %242 = vmatpush1.msra.mxu0 0.0
        %243 = vmatprep.subr.mxu0 0.0
        %244 = vmatpush1.msra.mxu0 0.0
        %245 = vmatprep.subr.mxu0 0.0
        %246 = vmatpush1.msra.mxu0 0.0
        %247 = vmatprep.subr.mxu0 0.0
        %248 = vmatpush1.msra.mxu0 0.0
        %249 = vmatprep.subr.mxu0 0.0
        %250 = vmatpush1.msra.mxu0 0.0
        %251 = vmatprep.subr.mxu0 0.0
        %252 = vmatpush1.msra.mxu0 0.0
        %253 = vmatprep.subr.mxu0 0.0
        %254 = vmatpush1.msra.mxu0 0.0
        %255 = vmatprep.subr.mxu0 0.0
        %256 = vmatpush1.msra.mxu0 0.0
        %257 = vmatprep.subr.mxu0 0.0
        %258 = vmatpush1.msra.mxu0 0.0
        %259 = vmatprep.subr.mxu0 0.0
        %260 = vmatpush1.msra.mxu0 0.0
        %261 = vmatprep.subr.mxu0 0.0
        %262 = vmatpush1.msra.mxu0 0.0
        %263 = vmatprep.subr.mxu0 0.0
        %264 = vmatpush1.msra.mxu0 0.0
        %265 = vmatprep.subr.mxu0 0.0
        %266 = vmatpush1.msra.mxu0 0.0
        %267 = vmatprep.subr.mxu0 0.0
        %268 = vmatpush1.msra.mxu0 0.0
        %269 = vmatprep.subr.mxu0 0.0
        %270 = vmatpush1.msra.mxu0 0.0
        %271 = vmatprep.subr.mxu0 0.0
        %272 = vmatpush1.msra.mxu0 0.0
        %273 = vmatprep.subr.mxu0 0.0
        %274 = vmatpush1.msra.mxu0 0.0
        %275 = vmatprep.subr.mxu0 0.0
        %276 = vmatpush1.msra.mxu0 0.0
        %277 = vmatprep.subr.mxu0 0.0
        %278 = vmatpush1.msra.mxu0 0.0
        %279 = vmatprep.subr.mxu0 0.0
        %280 = vmatpush1.msra.mxu0 0.0
        %281 = vmatprep.mubr.f32.mxu0 0.0
        %v282 = vand.u32 %v211, 4294901760
        %v283 = vsub.f32 %v211, %v282
        %v284 = vand.u32 %v283, 4294901760
        %v285 = vsub.f32 %v283, %v284
        %v286 = vand.u32 %v285, 4294901760
        %287 = vmatmul.mubr.f32.gmra.mrb[0].mxu0 %v286
        %v288 = vpop.f32.mrb[0].mxu0
        %v289 = vadd.f32 %v202, %v288
        %v290 = vpop.f32.mrb[0].mxu0
        %291 = vmatprep.mubr.f32.mxu0 0.0
        %v292 = vand.u32 %v214, 4294901760
        %v293 = vsub.f32 %v214, %v292
        %v294 = vand.u32 %v293, 4294901760
        %v295 = vsub.f32 %v293, %v294
        %v296 = vand.u32 %v295, 4294901760
        %297 = vmatmul.mubr.f32.gmra.mrb[0].mxu0 %v296
        %v298 = vpop.f32.mrb[0].mxu0
        %v299 = vadd.f32 %v207, %v298
        %v300 = vpop.f32.mrb[0].mxu0
        %301 = vdwg.mxu0
        %302 = vmatprep.subr.mxu0 0.0
        %v303 = vand.u32 %v196, 4294901760
        %v304 = vsub.f32 %v196, %v303
        %v305 = vand.u32 %v304, 4294901760
        %v306 = vsub.f32 %v304, %v305
        %v307 = vand.u32 %v306, 4294901760
        %308 = vmatpush1.msra.mxu0 %v307
        %309 = vmatprep.subr.mxu0 0.0
        %310 = vmatpush1.msra.mxu0 0.0
        %311 = vmatprep.subr.mxu0 0.0
        %312 = vmatpush1.msra.mxu0 0.0
        %313 = vmatprep.subr.mxu0 0.0
        %314 = vmatpush1.msra.mxu0 0.0
        %315 = vmatprep.subr.mxu0 0.0
        %316 = vmatpush1.msra.mxu0 0.0
        %317 = vmatprep.subr.mxu0 0.0
        %318 = vmatpush1.msra.mxu0 0.0
        %319 = vmatprep.subr.mxu0 0.0
        %320 = vmatpush1.msra.mxu0 0.0
        %321 = vmatprep.subr.mxu0 0.0
        %322 = vmatpush1.msra.mxu0 0.0
        %323 = vmatprep.subr.mxu0 0.0
        %324 = vmatpush1.msra.mxu0 0.0
        %325 = vmatprep.subr.mxu0 0.0
        %326 = vmatpush1.msra.mxu0 0.0
        %327 = vmatprep.subr.mxu0 0.0
        %328 = vmatpush1.msra.mxu0 0.0
        %329 = vmatprep.subr.mxu0 0.0
        %330 = vmatpush1.msra.mxu0 0.0
        %331 = vmatprep.subr.mxu0 0.0
        %332 = vmatpush1.msra.mxu0 0.0
        %333 = vmatprep.subr.mxu0 0.0
        %334 = vmatpush1.msra.mxu0 0.0
        %335 = vmatprep.subr.mxu0 0.0
        %336 = vmatpush1.msra.mxu0 0.0
        %337 = vmatprep.subr.mxu0 0.0
        %338 = vmatpush1.msra.mxu0 0.0
        %339 = vmatprep.subr.mxu0 0.0
        %340 = vmatpush1.msra.mxu0 0.0
        %341 = vmatprep.subr.mxu0 0.0
        %342 = vmatpush1.msra.mxu0 0.0
        %343 = vmatprep.subr.mxu0 0.0
        %344 = vmatpush1.msra.mxu0 0.0
        %345 = vmatprep.subr.mxu0 0.0
        %346 = vmatpush1.msra.mxu0 0.0
        %347 = vmatprep.subr.mxu0 0.0
        %348 = vmatpush1.msra.mxu0 0.0
        %349 = vmatprep.subr.mxu0 0.0
        %350 = vmatpush1.msra.mxu0 0.0
        %351 = vmatprep.subr.mxu0 0.0
        %352 = vmatpush1.msra.mxu0 0.0
        %353 = vmatprep.subr.mxu0 0.0
        %354 = vmatpush1.msra.mxu0 0.0
        %355 = vmatprep.subr.mxu0 0.0
        %356 = vmatpush1.msra.mxu0 0.0
        %357 = vmatprep.subr.mxu0 0.0
        %358 = vmatpush1.msra.mxu0 0.0
        %359 = vmatprep.subr.mxu0 0.0
        %360 = vmatpush1.msra.mxu0 0.0
        %361 = vmatprep.subr.mxu0 0.0
        %362 = vmatpush1.msra.mxu0 0.0
        %363 = vmatprep.subr.mxu0 0.0
        %364 = vmatpush1.msra.mxu0 0.0
        %365 = vmatprep.subr.mxu0 0.0
        %366 = vmatpush1.msra.mxu0 0.0
        %367 = vmatprep.subr.mxu0 0.0
        %368 = vmatpush1.msra.mxu0 0.0
        %369 = vmatprep.subr.mxu0 0.0
        %370 = vmatpush1.msra.mxu0 0.0
        %371 = vmatprep.mubr.f32.mxu0 0.0
        %v372 = vand.u32 %v211, 4294901760
        %373 = vmatmul.mubr.f32.gmra.mrb[0].mxu0 %v372
        %v374 = vpop.f32.mrb[0].mxu0
        %v375 = vadd.f32 %v289, %v374
        %v376 = vpop.f32.mrb[0].mxu0
        %377 = vmatprep.mubr.f32.mxu0 0.0
        %v378 = vand.u32 %v214, 4294901760
        %379 = vmatmul.mubr.f32.gmra.mrb[0].mxu0 %v378
        %v380 = vpop.f32.mrb[0].mxu0
        %v381 = vadd.f32 %v299, %v380
        %v382 = vpop.f32.mrb[0].mxu0
        %383 = vdwg.mxu0
        %384 = vmatprep.subr.mxu0 0.0
        %v385 = vand.u32 %v196, 4294901760
        %v386 = vsub.f32 %v196, %v385
        %387 = vmatpush1.msra.mxu0 %v386
        %388 = vmatprep.subr.mxu0 0.0
        %389 = vmatpush1.msra.mxu0 0.0
        %390 = vmatprep.subr.mxu0 0.0
        %391 = vmatpush1.msra.mxu0 0.0
        %392 = vmatprep.subr.mxu0 0.0
        %393 = vmatpush1.msra.mxu0 0.0
        %394 = vmatprep.subr.mxu0 0.0
        %395 = vmatpush1.msra.mxu0 0.0
        %396 = vmatprep.subr.mxu0 0.0
        %397 = vmatpush1.msra.mxu0 0.0
        %398 = vmatprep.subr.mxu0 0.0
        %399 = vmatpush1.msra.mxu0 0.0
        %400 = vmatprep.subr.mxu0 0.0
        %401 = vmatpush1.msra.mxu0 0.0
        %402 = vmatprep.subr.mxu0 0.0
        %403 = vmatpush1.msra.mxu0 0.0
        %404 = vmatprep.subr.mxu0 0.0
        %405 = vmatpush1.msra.mxu0 0.0
        %406 = vmatprep.subr.mxu0 0.0
        %407 = vmatpush1.msra.mxu0 0.0
        %408 = vmatprep.subr.mxu0 0.0
        %409 = vmatpush1.msra.mxu0 0.0
        %410 = vmatprep.subr.mxu0 0.0
        %411 = vmatpush1.msra.mxu0 0.0
        %412 = vmatprep.subr.mxu0 0.0
        %413 = vmatpush1.msra.mxu0 0.0
        %414 = vmatprep.subr.mxu0 0.0
        %415 = vmatpush1.msra.mxu0 0.0
        %416 = vmatprep.subr.mxu0 0.0
        %417 = vmatpush1.msra.mxu0 0.0
        %418 = vmatprep.subr.mxu0 0.0
        %419 = vmatpush1.msra.mxu0 0.0
        %420 = vmatprep.subr.mxu0 0.0
        %421 = vmatpush1.msra.mxu0 0.0
        %422 = vmatprep.subr.mxu0 0.0
        %423 = vmatpush1.msra.mxu0 0.0
        %424 = vmatprep.subr.mxu0 0.0
        %425 = vmatpush1.msra.mxu0 0.0
        %426 = vmatprep.subr.mxu0 0.0
        %427 = vmatpush1.msra.mxu0 0.0
        %428 = vmatprep.subr.mxu0 0.0
        %429 = vmatpush1.msra.mxu0 0.0
        %430 = vmatprep.subr.mxu0 0.0
        %431 = vmatpush1.msra.mxu0 0.0
        %432 = vmatprep.subr.mxu0 0.0
        %433 = vmatpush1.msra.mxu0 0.0
        %434 = vmatprep.subr.mxu0 0.0
        %435 = vmatpush1.msra.mxu0 0.0
        %436 = vmatprep.subr.mxu0 0.0
        %437 = vmatpush1.msra.mxu0 0.0
        %438 = vmatprep.subr.mxu0 0.0
        %439 = vmatpush1.msra.mxu0 0.0
        %440 = vmatprep.subr.mxu0 0.0
        %441 = vmatpush1.msra.mxu0 0.0
        %442 = vmatprep.subr.mxu0 0.0
        %443 = vmatpush1.msra.mxu0 0.0
        %444 = vmatprep.subr.mxu0 0.0
        %445 = vmatpush1.msra.mxu0 0.0
        %446 = vmatprep.subr.mxu0 0.0
        %447 = vmatpush1.msra.mxu0 0.0
        %448 = vmatprep.subr.mxu0 0.0
        %449 = vmatpush1.msra.mxu0 0.0
        %450 = vmatprep.mubr.f32.mxu0 0.0
        %v451 = vand.u32 %v211, 4294901760
        %v452 = vsub.f32 %v211, %v451
        %453 = vmatmul.mubr.f32.gmra.mrb[0].mxu0 %v452
        %v454 = vpop.f32.mrb[0].mxu0
        %v455 = vadd.f32 %v375, %v454
        %v456 = vpop.f32.mrb[0].mxu0
        %457 = vmatprep.mubr.f32.mxu0 0.0
        %v458 = vand.u32 %v214, 4294901760
        %v459 = vsub.f32 %v214, %v458
        %460 = vmatmul.mubr.f32.gmra.mrb[0].mxu0 %v459
        %v461 = vpop.f32.mrb[0].mxu0
        %v462 = vadd.f32 %v381, %v461
        %v463 = vpop.f32.mrb[0].mxu0
        %464 = vdwg.mxu0
        %465 = vmatprep.subr.mxu0 0.0
        %v466 = vand.u32 %v196, 4294901760
        %467 = vmatpush1.msra.mxu0 %v466
        %468 = vmatprep.subr.mxu0 0.0
        %469 = vmatpush1.msra.mxu0 0.0
        %470 = vmatprep.subr.mxu0 0.0
        %471 = vmatpush1.msra.mxu0 0.0
        %472 = vmatprep.subr.mxu0 0.0
        %473 = vmatpush1.msra.mxu0 0.0
        %474 = vmatprep.subr.mxu0 0.0
        %475 = vmatpush1.msra.mxu0 0.0
        %476 = vmatprep.subr.mxu0 0.0
        %477 = vmatpush1.msra.mxu0 0.0
        %478 = vmatprep.subr.mxu0 0.0
        %479 = vmatpush1.msra.mxu0 0.0
        %480 = vmatprep.subr.mxu0 0.0
        %481 = vmatpush1.msra.mxu0 0.0
        %482 = vmatprep.subr.mxu0 0.0
        %483 = vmatpush1.msra.mxu0 0.0
        %484 = vmatprep.subr.mxu0 0.0
        %485 = vmatpush1.msra.mxu0 0.0
        %486 = vmatprep.subr.mxu0 0.0
        %487 = vmatpush1.msra.mxu0 0.0
        %488 = vmatprep.subr.mxu0 0.0
        %489 = vmatpush1.msra.mxu0 0.0
        %490 = vmatprep.subr.mxu0 0.0
        %491 = vmatpush1.msra.mxu0 0.0
        %492 = vmatprep.subr.mxu0 0.0
        %493 = vmatpush1.msra.mxu0 0.0
        %494 = vmatprep.subr.mxu0 0.0
        %495 = vmatpush1.msra.mxu0 0.0
        %496 = vmatprep.subr.mxu0 0.0
        %497 = vmatpush1.msra.mxu0 0.0
        %498 = vmatprep.subr.mxu0 0.0
        %499 = vmatpush1.msra.mxu0 0.0
        %500 = vmatprep.subr.mxu0 0.0
        %501 = vmatpush1.msra.mxu0 0.0
        %502 = vmatprep.subr.mxu0 0.0
        %503 = vmatpush1.msra.mxu0 0.0
        %504 = vmatprep.subr.mxu0 0.0
        %505 = vmatpush1.msra.mxu0 0.0
        %506 = vmatprep.subr.mxu0 0.0
        %507 = vmatpush1.msra.mxu0 0.0
        %508 = vmatprep.subr.mxu0 0.0
        %509 = vmatpush1.msra.mxu0 0.0
        %510 = vmatprep.subr.mxu0 0.0
        %511 = vmatpush1.msra.mxu0 0.0
        %512 = vmatprep.subr.mxu0 0.0
        %513 = vmatpush1.msra.mxu0 0.0
        %514 = vmatprep.subr.mxu0 0.0
        %515 = vmatpush1.msra.mxu0 0.0
        %516 = vmatprep.subr.mxu0 0.0
        %517 = vmatpush1.msra.mxu0 0.0
        %518 = vmatprep.subr.mxu0 0.0
        %519 = vmatpush1.msra.mxu0 0.0
        %520 = vmatprep.subr.mxu0 0.0
        %521 = vmatpush1.msra.mxu0 0.0
        %522 = vmatprep.subr.mxu0 0.0
        %523 = vmatpush1.msra.mxu0 0.0
        %524 = vmatprep.subr.mxu0 0.0
        %525 = vmatpush1.msra.mxu0 0.0
        %526 = vmatprep.subr.mxu0 0.0
        %527 = vmatpush1.msra.mxu0 0.0
        %528 = vmatprep.subr.mxu0 0.0
        %529 = vmatpush1.msra.mxu0 0.0
        %530 = vmatprep.mubr.f32.mxu0 0.0
        %v531 = vand.u32 %v211, 4294901760
        %v532 = vsub.f32 %v211, %v531
        %v533 = vand.u32 %v532, 4294901760
        %534 = vmatmul.mubr.f32.gmra.mrb[0].mxu0 %v533
        %v535 = vpop.f32.mrb[0].mxu0
        %v536 = vadd.f32 %v455, %v535
        %v537 = vpop.f32.mrb[0].mxu0
        %538 = vmatprep.mubr.f32.mxu0 0.0
        %v539 = vand.u32 %v214, 4294901760
        %v540 = vsub.f32 %v214, %v539
        %v541 = vand.u32 %v540, 4294901760
        %542 = vmatmul.mubr.f32.gmra.mrb[0].mxu0 %v541
        %v543 = vpop.f32.mrb[0].mxu0
        %v544 = vadd.f32 %v462, %v543
        %v545 = vpop.f32.mrb[0].mxu0
        %546 = vdwg.mxu0
        %547 = vmatprep.subr.mxu0 0.0
        %v548 = vand.u32 %v196, 4294901760
        %v549 = vsub.f32 %v196, %v548
        %v550 = vand.u32 %v549, 4294901760
        %551 = vmatpush1.msra.mxu0 %v550
        %552 = vmatprep.subr.mxu0 0.0
        %553 = vmatpush1.msra.mxu0 0.0
        %554 = vmatprep.subr.mxu0 0.0
        %555 = vmatpush1.msra.mxu0 0.0
        %556 = vmatprep.subr.mxu0 0.0
        %557 = vmatpush1.msra.mxu0 0.0
        %558 = vmatprep.subr.mxu0 0.0
        %559 = vmatpush1.msra.mxu0 0.0
        %560 = vmatprep.subr.mxu0 0.0
        %561 = vmatpush1.msra.mxu0 0.0
        %562 = vmatprep.subr.mxu0 0.0
        %563 = vmatpush1.msra.mxu0 0.0
        %564 = vmatprep.subr.mxu0 0.0
        %565 = vmatpush1.msra.mxu0 0.0
        %566 = vmatprep.subr.mxu0 0.0
        %567 = vmatpush1.msra.mxu0 0.0
        %568 = vmatprep.subr.mxu0 0.0
        %569 = vmatpush1.msra.mxu0 0.0
        %570 = vmatprep.subr.mxu0 0.0
        %571 = vmatpush1.msra.mxu0 0.0
        %572 = vmatprep.subr.mxu0 0.0
        %573 = vmatpush1.msra.mxu0 0.0
        %574 = vmatprep.subr.mxu0 0.0
        %575 = vmatpush1.msra.mxu0 0.0
        %576 = vmatprep.subr.mxu0 0.0
        %577 = vmatpush1.msra.mxu0 0.0
        %578 = vmatprep.subr.mxu0 0.0
        %579 = vmatpush1.msra.mxu0 0.0
        %580 = vmatprep.subr.mxu0 0.0
        %581 = vmatpush1.msra.mxu0 0.0
        %582 = vmatprep.subr.mxu0 0.0
        %583 = vmatpush1.msra.mxu0 0.0
        %584 = vmatprep.subr.mxu0 0.0
        %585 = vmatpush1.msra.mxu0 0.0
        %586 = vmatprep.subr.mxu0 0.0
        %587 = vmatpush1.msra.mxu0 0.0
        %588 = vmatprep.subr.mxu0 0.0
        %589 = vmatpush1.msra.mxu0 0.0
        %590 = vmatprep.subr.mxu0 0.0
        %591 = vmatpush1.msra.mxu0 0.0
        %592 = vmatprep.subr.mxu0 0.0
        %593 = vmatpush1.msra.mxu0 0.0
        %594 = vmatprep.subr.mxu0 0.0
        %595 = vmatpush1.msra.mxu0 0.0
        %596 = vmatprep.subr.mxu0 0.0
        %597 = vmatpush1.msra.mxu0 0.0
        %598 = vmatprep.subr.mxu0 0.0
        %599 = vmatpush1.msra.mxu0 0.0
        %600 = vmatprep.subr.mxu0 0.0
        %601 = vmatpush1.msra.mxu0 0.0
        %602 = vmatprep.subr.mxu0 0.0
        %603 = vmatpush1.msra.mxu0 0.0
        %604 = vmatprep.subr.mxu0 0.0
        %605 = vmatpush1.msra.mxu0 0.0
        %606 = vmatprep.subr.mxu0 0.0
        %607 = vmatpush1.msra.mxu0 0.0
        %608 = vmatprep.subr.mxu0 0.0
        %609 = vmatpush1.msra.mxu0 0.0
        %610 = vmatprep.subr.mxu0 0.0
        %611 = vmatpush1.msra.mxu0 0.0
        %612 = vmatprep.subr.mxu0 0.0
        %613 = vmatpush1.msra.mxu0 0.0
        %614 = vmatprep.mubr.f32.mxu0 0.0
        %v615 = vand.u32 %v211, 4294901760
        %616 = vmatmul.mubr.f32.gmra.mrb[0].mxu0 %v615
        %v617 = vpop.f32.mrb[0].mxu0
        %v618 = vadd.f32 %v536, %v617
        %v619 = vpop.f32.mrb[0].mxu0
        %620 = vmatprep.mubr.f32.mxu0 0.0
        %v621 = vand.u32 %v214, 4294901760
        %622 = vmatmul.mubr.f32.gmra.mrb[0].mxu0 %v621
        %v623 = vpop.f32.mrb[0].mxu0
        %v624 = vadd.f32 %v544, %v623
        %v625 = vpop.f32.mrb[0].mxu0
        %626 = vdwg.mxu0
        %627 = vmatprep.subr.mxu0 0.0
        %v628 = vand.u32 %v196, 4294901760
        %629 = vmatpush1.msra.mxu0 %v628
        %630 = vmatprep.subr.mxu0 0.0
        %631 = vmatpush1.msra.mxu0 0.0
        %632 = vmatprep.subr.mxu0 0.0
        %633 = vmatpush1.msra.mxu0 0.0
        %634 = vmatprep.subr.mxu0 0.0
        %635 = vmatpush1.msra.mxu0 0.0
        %636 = vmatprep.subr.mxu0 0.0
        %637 = vmatpush1.msra.mxu0 0.0
        %638 = vmatprep.subr.mxu0 0.0
        %639 = vmatpush1.msra.mxu0 0.0
        %640 = vmatprep.subr.mxu0 0.0
        %641 = vmatpush1.msra.mxu0 0.0
        %642 = vmatprep.subr.mxu0 0.0
        %643 = vmatpush1.msra.mxu0 0.0
        %644 = vmatprep.subr.mxu0 0.0
        %645 = vmatpush1.msra.mxu0 0.0
        %646 = vmatprep.subr.mxu0 0.0
        %647 = vmatpush1.msra.mxu0 0.0
        %648 = vmatprep.subr.mxu0 0.0
        %649 = vmatpush1.msra.mxu0 0.0
        %650 = vmatprep.subr.mxu0 0.0
        %651 = vmatpush1.msra.mxu0 0.0
        %652 = vmatprep.subr.mxu0 0.0
        %653 = vmatpush1.msra.mxu0 0.0
        %654 = vmatprep.subr.mxu0 0.0
        %655 = vmatpush1.msra.mxu0 0.0
        %656 = vmatprep.subr.mxu0 0.0
        %657 = vmatpush1.msra.mxu0 0.0
        %658 = vmatprep.subr.mxu0 0.0
        %659 = vmatpush1.msra.mxu0 0.0
        %660 = vmatprep.subr.mxu0 0.0
        %661 = vmatpush1.msra.mxu0 0.0
        %662 = vmatprep.subr.mxu0 0.0
        %663 = vmatpush1.msra.mxu0 0.0
        %664 = vmatprep.subr.mxu0 0.0
        %665 = vmatpush1.msra.mxu0 0.0
        %666 = vmatprep.subr.mxu0 0.0
        %667 = vmatpush1.msra.mxu0 0.0
        %668 = vmatprep.subr.mxu0 0.0
        %669 = vmatpush1.msra.mxu0 0.0
        %670 = vmatprep.subr.mxu0 0.0
        %671 = vmatpush1.msra.mxu0 0.0
        %672 = vmatprep.subr.mxu0 0.0
        %673 = vmatpush1.msra.mxu0 0.0
        %674 = vmatprep.subr.mxu0 0.0
        %675 = vmatpush1.msra.mxu0 0.0
        %676 = vmatprep.subr.mxu0 0.0
        %677 = vmatpush1.msra.mxu0 0.0
        %678 = vmatprep.subr.mxu0 0.0
        %679 = vmatpush1.msra.mxu0 0.0
        %680 = vmatprep.subr.mxu0 0.0
        %681 = vmatpush1.msra.mxu0 0.0
        %682 = vmatprep.subr.mxu0 0.0
        %683 = vmatpush1.msra.mxu0 0.0
        %684 = vmatprep.subr.mxu0 0.0
        %685 = vmatpush1.msra.mxu0 0.0
        %686 = vmatprep.subr.mxu0 0.0
        %687 = vmatpush1.msra.mxu0 0.0
        %688 = vmatprep.subr.mxu0 0.0
        %689 = vmatpush1.msra.mxu0 0.0
        %690 = vmatprep.subr.mxu0 0.0
        %691 = vmatpush1.msra.mxu0 0.0
        %692 = vmatprep.mubr.f32.mxu0 0.0
        %v693 = vand.u32 %v211, 4294901760
        %694 = vmatmul.mubr.f32.gmra.mrb[0].mxu0 %v693
        %v695 = vpop.f32.mrb[0].mxu0
        %v696 = vadd.f32 %v618, %v695
        %v697 = vpop.f32.mrb[0].mxu0
        %698 = vmatprep.mubr.f32.mxu0 0.0
        %v699 = vand.u32 %v214, 4294901760
        %700 = vmatmul.mubr.f32.gmra.mrb[0].mxu0 %v699
        %v701 = vpop.f32.mrb[0].mxu0
        %v702 = vadd.f32 %v624, %v701
        %v703 = vpop.f32.mrb[0].mxu0
        %704 = vdwg.mxu0
        %v705 = vmax.f32 %v696, 0.0
        %v706 = vmax.f32 %v702, 0.0
        %707 = vst [vmem:[%s185] sm:$0xff] %v705
        %708 = vst [vmem:[%s185 + $0x8] sm:$0xff] %v706
        %s709 = sand.u32 %s109, 1
        %s710 = scalar_lea.sflag [#allocation3], %s709
        %s711 = sand.u32 %s109, 1
        %s712 = smul.addr %s711, 16
        %s713 = scalar_lea.vmem [#allocation2], %s712
        // Predicated region
        $region33: #{tpu_custom_call.1} parent=31 // pred_check
          %p714 = pneg %p119
        $region34: #{tpu_custom_call.1} parent=31 // pred_check_branch
          %716 = sbr.rel (%p714) target = $region36
        $region35: #{tpu_custom_call.1} parent=31 // pred_region
          %s718 = ssub.s32 256, 256
          %719 = vsyncadd %s710, %s718
          %s720 = smul.addr %s21, 4
          %s721 = sadd.s32 %s22, %s720
          %s722 = smul.addr %s721, 128
          %s723 = scalar_lea.hbm %s3, %s722
          %s724 = sshll.u32 %s713, 4
          %s725 = int_to_ptr.vmem [resolvable:$true] %s724
          %730 = dma.vmem_to_hbm [thread:$0]  %s725, 256, %s723, %s710, 128, 256, 8
        $region36: #{tpu_custom_call.1} parent=31 // pred_fallthru
          _
      $region32: #{tpu_custom_call.1} parent=5 // pred_fallthru
        _
      %p731 = scmp.le.s32.totalorder 2, %s12
      // Predicated region
      $region37: #{tpu_custom_call.1} parent=5 // pred_check
        %p732 = pneg %p731
      $region38: #{tpu_custom_call.1} parent=5 // pred_check_branch
        %734 = sbr.rel (%p732) target = $region40
      $region39: #{tpu_custom_call.1} parent=5 // pred_region
        %s735 = ssub.s32 %s12, 2
        // Predicated region
        $region41: #{tpu_custom_call.1} parent=39 // pred_check
          %p736 = pneg %p125
        $region42: #{tpu_custom_call.1} parent=39 // pred_check_branch
          %738 = sbr.rel (%p736) target = $region44
        $region43: #{tpu_custom_call.1} parent=39 // pred_region
          %s739 = sand.u32 %s110, 1
          %s740 = scalar_lea.sflag [#allocation3], %s739
          %s741 = sand.u32 %s110, 1
          %s742 = smul.addr %s741, 16
          %s743 = scalar_lea.vmem [#allocation2], %s742
          %744 = dma.done %s740, 256
        $region44: #{tpu_custom_call.1} parent=39 // pred_fallthru
          _
      $region40: #{tpu_custom_call.1} parent=5 // pred_fallthru
        _
    $region6: #{tpu_custom_call.1} parent=1 // loop_footer
      %s16 = sadd.s32 1, %s12
    $region7: #{tpu_custom_call.1} parent=1 // loop_footer_branch
      %11 = sbr.rel target = $region3
    $region8: #{tpu_custom_call.1} parent=1 // loop_exit
      _
    %745 = vsyncpa [#allocation3], 1
    %s746 = scalar_lea.sflag [#allocation3], 1
    %747 = vsyncpa %s746, 1

</llo_original>
